<compile_context>
chip_gen: v7x
topology: tpu7x:2x2x1
jax: 0.10.0
libtpu: 0.0.40
codegen_flags: <defaults>
</compile_context>

<pallas_src>
import jax
import jax.numpy as jnp
from jax.experimental import pallas as pl
from jax.experimental.pallas import tpu as pltpu

LANE = 128                 # lane-dense last dim (unmasked vst)
BLOCK_ROWS = 8192          # (8192, 128) f32 block = 4 MiB
VMEM_LIMIT = 32 * 1024 * 1024  # room for 4 x 4 MiB double-buffered blocks


# ---------------------------------------------------------------------------
# Kernels
# ---------------------------------------------------------------------------
def _pow_int(base, k):
    """base ** k (k >= 1) via repeated squaring — pure VPU multiplies."""
    result = None
    while k:
        if k & 1:
            result = base if result is None else result * base
        k >>= 1
        if k:
            base = base * base
    return result


def _make_const_kernel(c_scaled, inv_width, shape_val, int_exp):
    """Kernel with compile-time-constant parameters (no SMEM input)."""

    def kernel(x_ref, o_ref):
        x = x_ref[...].astype(jnp.float32)        # in-kernel cast (free, VPU)
        z = x * inv_width - c_scaled              # fused scale+shift (1 mul, 1 sub)
        z2 = z * z                                # |z|^2 without an abs
        if int_exp is not None:
            # (z^2)^k by repeated squaring — no transcendentals at all.
            if int_exp == 0:
                p = jnp.ones_like(z2)             # |z|^0 == 1 (incl. z == 0)
            else:
                p = _pow_int(z2, int_exp)
        else:
            # Generic exponent on the (otherwise idle) EUP: (z^2)^s = exp(s*log(z^2)).
            z2_safe = jnp.where(z2 == 0.0, jnp.float32(1.0), z2)
            p = jnp.exp(jnp.float32(shape_val) * jnp.log(z2_safe))
            p_at_zero = 0.0 if shape_val > 0 else (1.0 if shape_val == 0 else float("inf"))
            p = jnp.where(z2 == 0.0, jnp.float32(p_at_zero), p)
        # Exact divide: hidden under DMA (kernel is HBM-bound), keeps 1e-5 tol.
        o_ref[...] = (1.0 / (p + 1.0)).astype(o_ref.dtype)

    return kernel


def _bell_kernel_smem(params_ref, x_ref, o_ref):
    """Kernel for runtime (tensor-valued) parameters: [c*inv_w, inv_w, shape] in SMEM."""
    c_scaled = params_ref[0]
    inv_width = params_ref[1]
    shape = params_ref[2]

    x = x_ref[...].astype(jnp.float32)
    z = x * inv_width - c_scaled
    z2 = z * z
    # exp(shape*log(z2)) with a z==0 guard (fixes shape==0, z==0 -> NaN).
    z2_safe = jnp.where(z2 == 0.0, jnp.float32(1.0), z2)
    p = jnp.exp(shape * jnp.log(z2_safe))
    p_at_zero = jnp.where(shape > 0, jnp.float32(0.0),
                          jnp.where(shape == 0, jnp.float32(1.0), jnp.float32(jnp.inf)))
    p = jnp.where(z2 == 0.0, p_at_zero, p)
    o_ref[...] = (1.0 / (p + 1.0)).astype(o_ref.dtype)


# ---------------------------------------------------------------------------
# Wrapper
# ---------------------------------------------------------------------------
def _choose_block_rows(rows: int) -> int:
    """Pick a row-block size: big blocks, but >= ~4 grid steps on large inputs."""
    if rows <= 2048:
        # Small input: one block (full-extent block shape is always legal).
        return rows
    block = min(BLOCK_ROWS, pl.cdiv(rows, 4))   # >= 4 steps -> both v7x TCs busy
    block = max(8, (block // 8) * 8)            # multiple of 8 sublanes
    return block


def _run_pallas(kernel, x2d, out_dtype, params, transcendentals_per_elem):
    rows, lane = x2d.shape
    block_rows = _choose_block_rows(rows)
    grid = (pl.cdiv(rows, block_rows),)

    data_spec = pl.BlockSpec((block_rows, lane), lambda i: (i, 0))
    in_specs = [data_spec]
    args = [x2d]
    if params is not None:
        in_specs = [pl.BlockSpec(memory_space=pltpu.SMEM)] + in_specs
        args = [params] + args

    n = rows * lane
    bytes_accessed = n * x2d.dtype.itemsize + n * jnp.dtype(out_dtype).itemsize

    return pl.pallas_call(
        kernel,
        out_shape=jax.ShapeDtypeStruct((rows, lane), out_dtype),
        grid=grid,
        in_specs=in_specs,
        out_specs=data_spec,
        compiler_params=pltpu.CompilerParams(
            dimension_semantics=("parallel",),     # megacore-shardable on v7x
            vmem_limit_bytes=VMEM_LIMIT,
        ),
        cost_estimate=pl.CostEstimate(
            flops=6 * n,
            transcendentals=transcendentals_per_elem * n,
            bytes_accessed=bytes_accessed,
        ),
    )(*args)


def _bell_ref_jnp(x, center, width, shape):
    """Tiny pure-JAX fallback (used only for <128-element tails)."""
    return 1.0 / (1.0 + jnp.abs((x - center) / width) ** (2.0 * shape))


def bell(x, center, width, shape):
    """Apply the Bell transform elementwise via a Pallas TPU kernel."""
    orig_shape = x.shape
    orig_dtype = x.dtype
    n = x.size
    if n == 0:
        return x

    static_params = all(
        isinstance(v, (int, float)) and not isinstance(v, bool)
        for v in (center, width, shape)
    )

    if static_params:
        inv_w = 1.0 / float(width)
        c_scaled = float(center) * inv_w
        s = float(shape)
        int_exp = int(s) if (s.is_integer() and 0.0 <= s <= 64.0) else None
        kernel = _make_const_kernel(c_scaled, inv_w, s, int_exp)
        params = None
        transc = 0 if int_exp is not None else 2
    else:
        inv_w = 1.0 / jnp.asarray(width, jnp.float32).reshape(())
        c_scaled = jnp.asarray(center, jnp.float32).reshape(()) * inv_w
        s = jnp.asarray(shape, jnp.float32).reshape(())
        params = jnp.stack([c_scaled, inv_w, s])
        kernel = _bell_kernel_smem
        transc = 2

    flat = x.reshape(-1)
    rows = n // LANE
    rem = n - rows * LANE

    if rows == 0:
        # Fewer than 128 elements: a kernel launch is pure overhead.
        return _bell_ref_jnp(flat, center, width, shape).astype(orig_dtype).reshape(orig_shape)

    # 128-aligned bulk goes through the kernel (no whole-array pad / slice).
    bulk = flat[: rows * LANE].reshape(rows, LANE)
    bulk_out = _run_pallas(kernel, bulk, orig_dtype, params, transc)
    out_flat = bulk_out.reshape(-1)

    if rem:
        # <128-element ragged tail: trivial JAX expression, negligible traffic.
        tail_out = _bell_ref_jnp(flat[rows * LANE:], center, width, shape).astype(orig_dtype)
        out_flat = jnp.concatenate([out_flat, tail_out])

    return out_flat.reshape(orig_shape)


# ---------------------------------------------------------------------------
# Demo / self-test
# ---------------------------------------------------------------------------
if __name__ == "__main__":
    key = jax.random.PRNGKey(0)
    # NCHW-style input, small shapes
    x = jax.random.normal(key, (2, 4, 16, 16), dtype=jnp.float32)

    # Deterministic scalar parameters (Bell holds 3 scalar params)
    center = 0.5
    width = 1.5
    shape = 2.0

    out = bell(x, center, width, shape)
    out = jax.block_until_ready(out)

    # Pure-JAX reference (mirrors the torch forward exactly)
    ref = 1.0 / (1.0 + jnp.abs((x - center) / width) ** (2.0 * shape))
    assert out.shape == x.shape and out.dtype == x.dtype
    assert jnp.allclose(out, ref, atol=1e-5, rtol=1e-5)

    # Also exercise the runtime-parameter (SMEM) path once for coverage.
    out2 = bell(x, jnp.float32(center), jnp.float32(width), jnp.float32(2.5))
    out2 = jax.block_until_ready(out2)
    ref2 = 1.0 / (1.0 + jnp.abs((x - center) / width) ** (2.0 * 2.5))
    assert jnp.allclose(out2, ref2, atol=1e-5, rtol=1e-5)

    print("KERNEL_OK")
</pallas_src>

<mosaic_0001>
module attributes {stable_mosaic.version = 11 : i64} {
  func.func @kernel(%arg0: i32, %arg1: memref<16x128xf32, #tpu.memory_space<vmem>>, %arg2: memref<16x128xf32, #tpu.memory_space<vmem>>) attributes {dimension_semantics = [#tpu.dimension_semantics<parallel>], iteration_bounds = array<i64: 1>, scalar_prefetch = 0 : i64, scratch_operands = 0 : i64, tpu.core_type = #tpu.core_type<tc>, window_params = [{transform_indices = @transform_0, window_bounds = array<i64: 16, 128>}, {transform_indices = @transform_1, window_bounds = array<i64: 16, 128>}]} {
    %c0 = arith.constant 0 : index
    %c0_0 = arith.constant 0 : index
    %0 = vector.load %arg1[%c0, %c0_0] : memref<16x128xf32, #tpu.memory_space<vmem>>, vector<16x128xf32>
    %cst = arith.constant 0.666666686 : f32
    %1 = vector.broadcast %cst : f32 to vector<16x128xf32>
    %2 = arith.mulf %0, %1 : vector<16x128xf32>
    %cst_1 = arith.constant 0.333333343 : f32
    %3 = vector.broadcast %cst_1 : f32 to vector<16x128xf32>
    %4 = arith.subf %2, %3 : vector<16x128xf32>
    %5 = arith.mulf %4, %4 : vector<16x128xf32>
    %6 = arith.mulf %5, %5 : vector<16x128xf32>
    %cst_2 = arith.constant 1.000000e+00 : f32
    %7 = vector.broadcast %cst_2 : f32 to vector<16x128xf32>
    %8 = arith.addf %6, %7 : vector<16x128xf32>
    %cst_3 = arith.constant 1.000000e+00 : f32
    %9 = vector.broadcast %cst_3 : f32 to vector<16x128xf32>
    %10 = arith.divf %9, %8 : vector<16x128xf32>
    %c0_4 = arith.constant 0 : index
    %c0_5 = arith.constant 0 : index
    %11 = vector.load %arg2[%c0_4, %c0_5] : memref<16x128xf32, #tpu.memory_space<vmem>>, vector<16x128xf32>
    tpu.vector_store %arg2[%c0_4, %c0_5], %10 {strides = array<i32>} : memref<16x128xf32, #tpu.memory_space<vmem>>, vector<16x128xf32>,
    return
  }
  func.func @transform_0(%arg0: i32) -> (i32, i32) {
    %c0_i32 = arith.constant 0 : i32
    %c0_i32_0 = arith.constant 0 : i32
    return %arg0, %c0_i32 : i32, i32
  }
  func.func @transform_1(%arg0: i32) -> (i32, i32) {
    %c0_i32 = arith.constant 0 : i32
    %c0_i32_0 = arith.constant 0 : i32
    return %arg0, %c0_i32 : i32, i32
  }
}

</mosaic_0001>

<llo_original>
// kernel: tpu_custom_call.1
$region0: #{tpu_custom_call.1}
  #allocation0 [shape = 'u32[]', space=smem, size = 0x4, offset = 0x4, fixed_abs, tag = 'smem constant byte address 0x4 - core index']
  #allocation1 [shape = 'u32[144,128]{1,0:T(1,128)}', space=vmem, size = 0x12000, scoped, tag = 'internal scratch']
  %s0 = inlined_call_operand.hbm [shape: f32[16,128], index: 0, kind: input, shape index: {}]
  %s1 = inlined_call_operand.hbm [shape: f32[16,128], index: 1, kind: output, shape index: {}]
  %s2 = sld [smem:[#allocation0]]
  $region18: #{tpu_custom_call.1} parent=0
    _
  %s4 = ssub.s32 1, %s2
  %s5 = scalar_select 0, %s4, %s2
  $region1: #{tpu_custom_call.1} parent=0
    #allocation2 [shape = 'u8[8192]{0}', space=vmem, size = 0x2000, scoped, tag = 'input window, operand 0, single buffered']
    #allocation3 [shape = 's32[1]{0}', space=sflag, size = 0x4, scoped, tag = 'scoped memory for tpu_custom_call.1']
    #allocation4 [shape = 's32[1]{0}', space=sflag, size = 0x4, scoped, tag = 'scoped memory for tpu_custom_call.1']
    #allocation5 [shape = 'u8[8192]{0}', space=vmem, size = 0x2000, scoped, tag = 'output window, operand 0, single buffered']
    %6 = vsyncpa [#allocation3], 0
    %7 = vsyncpa [#allocation4], 0
    // Predicated region
    $region2: #{tpu_custom_call.1} parent=1 // pred_check
      _
    $region3: #{tpu_custom_call.1} parent=1 // pred_check_branch
      %9 = sbr.rel (0) target = $region5
    $region4: #{tpu_custom_call.1} parent=1 // pred_region
      %s11 = ssub.s32 256, 256
      %12 = vsyncadd [#allocation3], %s11
      %s13 = sshll.u32 [#allocation2], 4
      %s14 = int_to_ptr.vmem [resolvable:$true] %s13
      %19 = dma.hbm_to_vmem [thread:$0]  %s0, 256, %s14, [#allocation3], 128, 128, 8
    $region5: #{tpu_custom_call.1} parent=1 // pred_fallthru
      _
    // Predicated region
    $region6: #{tpu_custom_call.1} parent=1 // pred_check
      _
    $region7: #{tpu_custom_call.1} parent=1 // pred_check_branch
      %21 = sbr.rel (0) target = $region9
    $region8: #{tpu_custom_call.1} parent=1 // pred_region
      %22 = dma.done [#allocation3], 256
    $region9: #{tpu_custom_call.1} parent=1 // pred_fallthru
      _
    %v23 = vld [vmem:[#allocation2] sm:$0xff]
    %v24 = vld [vmem:[#allocation2 + $0x8] sm:$0xff]
    %v25 = vmul.f32 %v23, 0.6666667
    %v26 = vmul.f32 %v24, 0.6666667
    %v27 = vsub.f32 %v25, 0.33333334
    %v28 = vsub.f32 %v26, 0.33333334
    %v29 = vmul.f32 %v27, %v27
    %v30 = vmul.f32 %v28, %v28
    %v31 = vmul.f32 %v29, %v29
    %v32 = vmul.f32 %v30, %v30
    %v33 = vadd.f32 %v31, 1.0
    %v34 = vadd.f32 %v32, 1.0
    %v35 = vrcp.pop %v33
    %v36 = vmul.f32 1.0, %v35
    %v37 = vrcp.pop %v34
    %v38 = vmul.f32 1.0, %v37
    %39 = vst [vmem:[#allocation5] sm:$0xff] %v36
    %40 = vst [vmem:[#allocation5 + $0x8] sm:$0xff] %v38
    // Predicated region
    $region10: #{tpu_custom_call.1} parent=1 // pred_check
      _
    $region11: #{tpu_custom_call.1} parent=1 // pred_check_branch
      %42 = sbr.rel (0) target = $region13
    $region12: #{tpu_custom_call.1} parent=1 // pred_region
      %s44 = ssub.s32 256, 256
      %45 = vsyncadd [#allocation4], %s44
      %s46 = sshll.u32 [#allocation5], 4
      %s47 = int_to_ptr.vmem [resolvable:$true] %s46
      %52 = dma.vmem_to_hbm [thread:$0]  %s47, 256, %s1, [#allocation4], 128, 128, 8
    $region13: #{tpu_custom_call.1} parent=1 // pred_fallthru
      _
    // Predicated region
    $region14: #{tpu_custom_call.1} parent=1 // pred_check
      _
    $region15: #{tpu_custom_call.1} parent=1 // pred_check_branch
      %54 = sbr.rel (0) target = $region17
    $region16: #{tpu_custom_call.1} parent=1 // pred_region
      %55 = dma.done [#allocation4], 256
    $region17: #{tpu_custom_call.1} parent=1 // pred_fallthru
      _
    %56 = vsyncpa [#allocation3], 1
    %57 = vsyncpa [#allocation4], 1

</llo_original>
